<compile_context>
chip_gen: v6e
topology: v6e:2x2x1
jax: 0.10.0
libtpu: 0.0.40
codegen_flags: <defaults>
</compile_context>

<pallas_src>
import jax
import jax.numpy as jnp
from jax.experimental import pallas as pl
from jax.experimental.pallas import tpu as pltpu


def _round_up(x: int, m: int) -> int:
    return ((x + m - 1) // m) * m


def _choose_h_tiling(H: int, keep_last: int) -> tuple[int, int]:
    """Returns (th, h0): lane tile width and aligned start column.

    Only columns [h0, H) are ever read from HBM; th divides (H - h0) and is a
    multiple of 128, or equals H when H is not 128-aligned (lane rule: last
    block dim must be a multiple of 128 or equal the full array dim)."""
    if H % 128 != 0:
        return H, 0  # single full-width block
    need = H if (keep_last <= 0 or keep_last >= H) else keep_last
    th = 128
    for cand in (1024, 512, 256):  # widest lane tile that divides H & fits need
        if H % cand == 0 and cand <= _round_up(need, 128):
            th = cand
            break
    h0 = ((H - need) // th) * th
    return th, h0


def _make_count_kernel(tm: int, th: int, n_valid_rows: int, needs_mask: bool):
    def kernel(x_ref, acc_ref):
        # x_ref:   (tm, th) tile of the flattened (B*S, H) input
        # acc_ref: (8, th) int32 sublane-dense accumulator, resident across the
        #          row (reduction) grid axis.
        @pl.when(pl.program_id(1) == 0)
        def _():
            acc_ref[...] = jnp.zeros_like(acc_ref)

        pos = (x_ref[...] > 0).astype(jnp.int32)          # VPU compare + cast
        if needs_mask:  # ragged last row tile: zero out-of-range rows
            row0 = pl.program_id(1) * tm
            rows = row0 + jax.lax.broadcasted_iota(jnp.int32, (tm, th), 0)
            pos = jnp.where(rows < n_valid_rows, pos, 0)

        # Sublane-aligned partial sum: (tm, th) -> (tm//8, 8, th) -> (8, th).
        # Pure vreg adds each step (no per-step cross-sublane XLU reduce, no
        # masked 1-of-8-sublane accumulator stores); the final 8 -> 1 reduce
        # happens once in the JAX wrapper.
        acc_ref[...] += jnp.sum(pos.reshape(tm // 8, 8, th), axis=0)

    return kernel


# Per-input-buffer VMEM budget; BlockSpec double-buffers, so ~2x this is
# resident — comfortably inside v7x's 64 MiB VMEM (and v5e/v6e's 128 MiB),
# and under the 32 MiB scoped limit we request below.
_VMEM_BYTES_PER_BUFFER = 8 * 1024 * 1024


def count_positive_tail(x: jax.Array, keep_last: int) -> jax.Array:
    """Pallas equivalent of `torch.sum(x > 0, dim=(0, 1))[-keep_last:]`.

    Returns an int32 vector of length keep_last (or H if keep_last is 0 or
    >= H, matching Python/torch slice semantics)."""
    B, S, H = x.shape
    N = B * S
    x2 = x.reshape(N, H)  # free metadata reshape; rows stay contiguous

    th, h0 = _choose_h_tiling(H, keep_last)
    Hs = H - h0                      # columns actually read from HBM
    n_h = Hs // th
    h0_blk = h0 // th                # column-block offset used by index_map

    bytes_per = jnp.dtype(x.dtype).itemsize
    tm = _VMEM_BYTES_PER_BUFFER // (th * bytes_per)
    tm -= tm % 8
    tm = max(8, min(tm, _round_up(N, 8)))
    n_rows = pl.cdiv(N, tm)
    needs_mask = (N % tm) != 0

    kernel = _make_count_kernel(tm, th, N, needs_mask)

    acc = pl.pallas_call(
        kernel,
        out_shape=jax.ShapeDtypeStruct((8, Hs), jnp.int32),
        grid_spec=pltpu.PrefetchScalarGridSpec(
            num_scalar_prefetch=0,
            grid=(n_h, n_rows),  # (parallel H tiles, reduction row tiles)
            in_specs=[
                pl.BlockSpec((tm, th), lambda j, i: (i, j + h0_blk)),
            ],
            out_specs=pl.BlockSpec((8, th), lambda j, i: (0, j)),
        ),
        compiler_params=pltpu.CompilerParams(
            dimension_semantics=("parallel", "arbitrary"),
            vmem_limit_bytes=32 * 1024 * 1024,
        ),
    )(x2)

    counts = jnp.sum(acc, axis=0)    # tiny (8, Hs) -> (Hs,) final reduce
    if 0 < keep_last < H:
        counts = counts[-keep_last:]
    return counts


class InternalsTracker:
    """JAX/Pallas port of the PyTorch InternalsTracker module (forward path)."""

    all_datasets: dict = {}

    def __init__(self, label: str, keep_last: int = 0):
        self.label = label
        self.keep_last = keep_last
        InternalsTracker.all_datasets[label] = 0

    def __call__(self, x: jax.Array) -> jax.Array:
        counts = count_positive_tail(x, self.keep_last)
        # TODO(synk): torch.sum over bool yields int64; per-call counts here are
        # int32 (TPU-native, cannot overflow for realistic B*S).  Widen the
        # host-side running sum if ~2^31 positives per hidden index could
        # accumulate across calls.
        # TODO(synk): this class-dict update is a host-side Python side effect;
        # like the .cpu() call in the PyTorch original it must run eagerly (it
        # would capture tracers under jax.jit).
        InternalsTracker.all_datasets[self.label] = (
            InternalsTracker.all_datasets[self.label] + counts
        )
        return x  # passthrough, like the PyTorch module

    @classmethod
    def reset_all(cls):
        for k in cls.all_datasets:
            cls.all_datasets[k] = 0


if __name__ == "__main__":
    key = jax.random.PRNGKey(0)

    # Primary demo shape.
    B, S, H = 2, 16, 256
    keep_last = 64
    x = jax.random.normal(key, (B, S, H), dtype=jnp.float32)

    tracker = InternalsTracker("00-x", keep_last=keep_last)
    out = jax.block_until_ready(tracker(x))
    acc = jax.block_until_ready(InternalsTracker.all_datasets["00-x"])

    ref = jnp.sum((x > 0).astype(jnp.int32), axis=(0, 1))[-keep_last:]
    assert out.shape == x.shape and bool(jnp.all(out == x))
    assert acc.shape == (keep_last,)
    assert bool(jnp.all(acc == ref))

    # Extra coverage: ragged rows + multi-tile H, non-128-aligned H with
    # keep_last=0 (full vector), keep_last > H, and a wide-H / big keep_last
    # case that exercises the 512-lane tile + trimmed start column.
    for (b, s, h, kl) in (
        (2, 7, 384, 200),
        (2, 16, 96, 0),
        (3, 5, 256, 4096),
        (2, 24, 1536, 1200),
    ):
        xt = jax.random.normal(jax.random.PRNGKey(1 + kl), (b, s, h), jnp.float32)
        got = jax.block_until_ready(count_positive_tail(xt, kl))
        want = jnp.sum((xt > 0).astype(jnp.int32), axis=(0, 1))
        if 0 < kl < h:
            want = want[-kl:]
        assert got.shape == want.shape and bool(jnp.all(got == want)), (b, s, h, kl)

    print("KERNEL_OK")
</pallas_src>

<mosaic_0001>
module attributes {stable_mosaic.version = 11 : i64} {
  func.func @kernel(%arg0: i32, %arg1: i32, %arg2: memref<32x128xf32, #tpu.memory_space<vmem>>, %arg3: memref<8x128xi32, #tpu.memory_space<vmem>>) attributes {dimension_semantics = [#tpu.dimension_semantics<parallel>, #tpu.dimension_semantics<arbitrary>], iteration_bounds = array<i64: 1, 1>, scalar_prefetch = 0 : i64, scratch_operands = 0 : i64, tpu.core_type = #tpu.core_type<tc>, window_params = [{transform_indices = @transform_0, window_bounds = array<i64: 32, 128>}, {transform_indices = @transform_1, window_bounds = array<i64: 8, 128>}]} {
    %c0_i32 = arith.constant 0 : i32
    %0 = arith.cmpi eq, %arg1, %c0_i32 : i32
    %1 = arith.extui %0 : i1 to i32
    %c0_i32_0 = arith.constant 0 : i32
    %2 = arith.cmpi ne, %1, %c0_i32_0 : i32
    scf.if %2 {
      %c0_i32_7 = arith.constant 0 : i32
      %12 = vector.broadcast %c0_i32_7 : i32 to vector<8x128xi32>
      %c0_8 = arith.constant 0 : index
      %c0_9 = arith.constant 0 : index
      %13 = vector.load %arg3[%c0_8, %c0_9] : memref<8x128xi32, #tpu.memory_space<vmem>>, vector<8x128xi32>
      tpu.vector_store %arg3[%c0_8, %c0_9], %12 {strides = array<i32>} : memref<8x128xi32, #tpu.memory_space<vmem>>, vector<8x128xi32>,
    } else {
    }
    %c0 = arith.constant 0 : index
    %c0_1 = arith.constant 0 : index
    %3 = vector.load %arg2[%c0, %c0_1] : memref<32x128xf32, #tpu.memory_space<vmem>>, vector<32x128xf32>
    %cst = arith.constant 0.000000e+00 : f32
    %4 = vector.broadcast %cst : f32 to vector<32x128xf32>
    %5 = arith.cmpf ogt, %3, %4 : vector<32x128xf32>
    %6 = arith.extui %5 : vector<32x128xi1> to vector<32x128xi32>
    %c0_2 = arith.constant 0 : index
    %c0_3 = arith.constant 0 : index
    %7 = vector.load %arg3[%c0_2, %c0_3] : memref<8x128xi32, #tpu.memory_space<vmem>>, vector<8x128xi32>
    %8 = vector.shape_cast %6 : vector<32x128xi32> to vector<4x8x128xi32>
    %cst_4 = arith.constant dense<0> : vector<8x128xi32>
    %9 = vector.multi_reduction <add>, %8, %cst_4 [0] : vector<4x8x128xi32> to vector<8x128xi32>
    %10 = arith.addi %7, %9 : vector<8x128xi32>
    %c0_5 = arith.constant 0 : index
    %c0_6 = arith.constant 0 : index
    %11 = vector.load %arg3[%c0_5, %c0_6] : memref<8x128xi32, #tpu.memory_space<vmem>>, vector<8x128xi32>
    tpu.vector_store %arg3[%c0_5, %c0_6], %10 {strides = array<i32>} : memref<8x128xi32, #tpu.memory_space<vmem>>, vector<8x128xi32>,
    return
  }
  func.func @transform_0(%arg0: i32, %arg1: i32) -> (i32, i32) {
    %c1_i32 = arith.constant 1 : i32
    %0 = arith.addi %arg0, %c1_i32 : i32
    %c0_i32 = arith.constant 0 : i32
    return %arg1, %0 : i32, i32
  }
  func.func @transform_1(%arg0: i32, %arg1: i32) -> (i32, i32) {
    %c0_i32 = arith.constant 0 : i32
    %c0_i32_0 = arith.constant 0 : i32
    return %c0_i32, %arg0 : i32, i32
  }
}

</mosaic_0001>

<llo_original>
// kernel: tpu_custom_call.1
$region0: #{tpu_custom_call.1}
  #allocation0 [shape = 'u32[]', space=smem, size = 0x4, offset = 0x4, fixed_abs, tag = 'smem constant byte address 0x4 - core index']
  #allocation1 [shape = 'u32[144,128]{1,0:T(1,128)}', space=vmem, size = 0x12000, scoped, tag = 'internal scratch']
  %s0 = inlined_call_operand.hbm [shape: f32[32,256], index: 0, kind: input, shape index: {}]
  %s1 = inlined_call_operand.hbm [shape: s32[8,128], index: 1, kind: output, shape index: {}]
  %s2 = sld [smem:[#allocation0]]
  $region22: #{tpu_custom_call.1} parent=0
    _
  %s4 = ssub.s32 1, %s2
  %s5 = scalar_select 0, %s4, %s2
  $region1: #{tpu_custom_call.1} parent=0
    #allocation2 [shape = 'u8[16384]{0}', space=vmem, size = 0x4000, scoped, tag = 'input window, operand 0, single buffered']
    #allocation3 [shape = 's32[1]{0}', space=sflag, size = 0x4, scoped, tag = 'scoped memory for tpu_custom_call.1']
    #allocation4 [shape = 's32[1]{0}', space=sflag, size = 0x4, scoped, tag = 'scoped memory for tpu_custom_call.1']
    #allocation5 [shape = 'u8[4096]{0}', space=vmem, size = 0x1000, scoped, tag = 'output window, operand 0, single buffered']
    %6 = vsyncpa [#allocation3], 0
    %7 = vsyncpa [#allocation4], 0
    // Predicated region
    $region2: #{tpu_custom_call.1} parent=1 // pred_check
      _
    $region3: #{tpu_custom_call.1} parent=1 // pred_check_branch
      %9 = sbr.rel (0) target = $region5
    $region4: #{tpu_custom_call.1} parent=1 // pred_region
      %s10 = sadd.s32 0, 1
      %s12 = ssub.s32 512, 512
      %13 = vsyncadd [#allocation3], %s12
      %s14 = smul.addr %s10, 128
      %s15 = scalar_lea.hbm %s0, %s14
      %s16 = sshll.u32 [#allocation2], 4
      %s17 = int_to_ptr.vmem [resolvable:$true] %s16
      %22 = dma.hbm_to_vmem [thread:$0]  %s15, 512, %s17, [#allocation3], 256, 128, 8
    $region5: #{tpu_custom_call.1} parent=1 // pred_fallthru
      _
    // Predicated region
    $region6: #{tpu_custom_call.1} parent=1 // pred_check
      _
    $region7: #{tpu_custom_call.1} parent=1 // pred_check_branch
      %24 = sbr.rel (0) target = $region9
    $region8: #{tpu_custom_call.1} parent=1 // pred_region
      %25 = dma.done [#allocation3], 512
    $region9: #{tpu_custom_call.1} parent=1 // pred_fallthru
      _
    %s26 = sadd.s32 0, 1
    %p27 = scmp.eq.s32.totalorder 0, 0
    // Predicated region
    $region10: #{tpu_custom_call.1} parent=1 // pred_check
      %p28 = pneg %p27
    $region11: #{tpu_custom_call.1} parent=1 // pred_check_branch
      %30 = sbr.rel (%p28) target = $region13
    $region12: #{tpu_custom_call.1} parent=1 // pred_region
      %31 = vst [vmem:[#allocation5] sm:$0xff] 0
    $region13: #{tpu_custom_call.1} parent=1 // pred_fallthru
      _
    %v32 = vld [vmem:[#allocation2] sm:$0xff]
    %v33 = vld [vmem:[#allocation2 + $0x8] sm:$0xff]
    %v34 = vld [vmem:[#allocation2 + $0x10] sm:$0xff]
    %v35 = vld [vmem:[#allocation2 + $0x18] sm:$0xff]
    %vm36 = vcmp.gt.f32.partialorder %v32, 0.0
    %vm37 = vcmp.gt.f32.partialorder %v33, 0.0
    %vm38 = vcmp.gt.f32.partialorder %v34, 0.0
    %vm39 = vcmp.gt.f32.partialorder %v35, 0.0
    %v40 = vsel %vm36, 1, 0
    %v41 = vsel %vm37, 1, 0
    %v42 = vsel %vm38, 1, 0
    %v43 = vsel %vm39, 1, 0
    %v44 = vld [vmem:[#allocation5] sm:$0xff]
    %v45 = vadd.s32 %v40, %v41
    %v46 = vadd.s32 %v42, %v43
    %v47 = vadd.s32 %v45, %v46
    %v48 = vadd.s32 %v44, %v47
    %49 = vst [vmem:[#allocation5] sm:$0xff] %v48
    // Predicated region
    $region14: #{tpu_custom_call.1} parent=1 // pred_check
      _
    $region15: #{tpu_custom_call.1} parent=1 // pred_check_branch
      %51 = sbr.rel (0) target = $region17
    $region16: #{tpu_custom_call.1} parent=1 // pred_region
      %s53 = ssub.s32 128, 128
      %54 = vsyncadd [#allocation4], %s53
      %s56 = sshll.u32 [#allocation5], 4
      %s57 = int_to_ptr.vmem [resolvable:$true] %s56
      %59 = dma.vmem_to_hbm [thread:$0]  %s57, 128, %s1, [#allocation4]
    $region17: #{tpu_custom_call.1} parent=1 // pred_fallthru
      _
    // Predicated region
    $region18: #{tpu_custom_call.1} parent=1 // pred_check
      _
    $region19: #{tpu_custom_call.1} parent=1 // pred_check_branch
      %61 = sbr.rel (0) target = $region21
    $region20: #{tpu_custom_call.1} parent=1 // pred_region
      %62 = dma.done [#allocation4], 128
    $region21: #{tpu_custom_call.1} parent=1 // pred_fallthru
      _
    %63 = vsyncpa [#allocation3], 1
    %64 = vsyncpa [#allocation4], 1

</llo_original>
